<compile_context>
chip_gen: v5e
topology: v5e:2x2
jax: 0.10.0
libtpu: 0.0.40
codegen_flags: <defaults>
</compile_context>

<pallas_src>
import numpy as np
import jax
import jax.numpy as jnp
from jax.experimental import pallas as pl
from jax.experimental.pallas import tpu as pltpu

MXU_DTYPE = jnp.bfloat16   # bf16 inputs / f32 accumulate on the MXU
_EPS = 1e-30               # clamp for l2norm sums (padded rows only)


def _round_up(x, m):
    return ((x + m - 1) // m) * m


def encoder_kernel(x_ref, wcnn_ref, wfc_ref, bfc_ref, out_ref, acc_ref):
    # x_ref:    (tm, tk)   f32   flattened-image tile (cast to bf16 in-body)
    # wcnn_ref: (tk, Dp)   bf16  backbone-proxy weight K-slice (pre-transposed)
    # wfc_ref:  (Dp, Ep)   bf16  fc weight (resident, single-buffered)
    # bfc_ref:  (1, Ep)    f32   fc bias   (resident, single-buffered)
    # out_ref:  (tm, Ep)   f32   (resident across K axis)
    # acc_ref:  (tm, Dp)   f32   scratch accumulator
    k = pl.program_id(1)

    @pl.when(k == 0)
    def _init():
        acc_ref[...] = jnp.zeros_like(acc_ref)

    # --- backbone proxy matmul (MXU, bf16 in / f32 accumulate) ---
    acc_ref[...] += jnp.dot(x_ref[...].astype(MXU_DTYPE), wcnn_ref[...],
                            preferred_element_type=jnp.float32)

    @pl.when(k == pl.num_programs(1) - 1)
    def _epilogue():
        # ReLU (backbone-proxy nonlinearity); epilogue math in f32
        feats = jnp.maximum(acc_ref[...], 0.0)

        # l2norm #1: x * rsqrt(sum(x^2))  (rsqrt -> EUP, mul -> VPU)
        sq1 = jnp.maximum(jnp.sum(feats * feats, axis=1, keepdims=True), _EPS)
        feats = feats * jax.lax.rsqrt(sq1)

        # fc layer: bf16 matmul (unit-norm inputs -> bf16 safe), f32 acc + bias
        emb = jnp.dot(feats.astype(MXU_DTYPE), wfc_ref[...],
                      preferred_element_type=jnp.float32) + bfc_ref[...]

        # l2norm #2 (no_imgnorm=False); use_abs=False -> no abs
        sq2 = jnp.maximum(jnp.sum(emb * emb, axis=1, keepdims=True), _EPS)
        out_ref[...] = (emb * jax.lax.rsqrt(sq2)).astype(out_ref.dtype)


def prepare_params(w_cnn, w_fc, b_fc, *, tk=None):
    """One-time weight prep: transpose + pad + cast. Not on the per-call path.

    w_cnn: (D_cnn, F) backbone-proxy weight (PyTorch layout)
    w_fc:  (E, D_cnn) fc weight (PyTorch layout)
    b_fc:  (E,)       fc bias
    """
    D_cnn, F = w_cnn.shape
    E = w_fc.shape[0]

    if tk is None:
        # Larger K tile (fewer acc RMW steps); Buffered(1) fc weight + bf16
        # freed the VMEM for it. Budget: tk*Dp*2B per buffer for the w_cnn slice.
        tk = min(1024, _round_up(F, 128))
    Fp = _round_up(F, tk)
    Dp = _round_up(D_cnn, 128)
    Ep = _round_up(E, 128)

    w_cnn_t = jnp.asarray(w_cnn, jnp.float32).T                  # (F, D_cnn)
    w_cnn_t = jnp.pad(w_cnn_t, ((0, Fp - F), (0, Dp - D_cnn))).astype(MXU_DTYPE)
    w_fc_t = jnp.asarray(w_fc, jnp.float32).T                    # (D_cnn, E)
    w_fc_t = jnp.pad(w_fc_t, ((0, Dp - D_cnn), (0, Ep - E))).astype(MXU_DTYPE)
    b_fc_p = jnp.pad(jnp.asarray(b_fc, jnp.float32).reshape(1, E),
                     ((0, 0), (0, Ep - E)))

    return dict(w_cnn_t=w_cnn_t, w_fc_t=w_fc_t, b_fc=b_fc_p,
                F=F, Fp=Fp, D=D_cnn, Dp=Dp, E=E, Ep=Ep, tk=tk)


def encoder_image_full(x_nchw, params, *, tm=None):
    """Forward pass. x_nchw: (B, C, H, W) float32."""
    B = x_nchw.shape[0]
    F, Fp = params["F"], params["Fp"]
    Dp = params["Dp"]
    E, Ep = params["E"], params["Ep"]
    tk = params["tk"]

    if tm is None:
        # Split the batch ~in half so the "parallel" grid axis has >=2
        # programs (both v7x TensorCores work) once B is large enough;
        # cap at 256 to keep the (tm, Dp) f32 accumulator within budget.
        b8 = _round_up(B, 8)
        tm = min(256, max(8, _round_up(pl.cdiv(b8, 2), 8)))
    Bp = _round_up(B, tm)

    # per-call glue: flatten (row-major NCHW); pad only if shapes require it.
    # x stays f32 here; the bf16 cast happens inside the kernel body, so there
    # is no extra full-HBM cast pass before the kernel reads x.
    x_flat = x_nchw.reshape(B, -1)
    if Bp != B or Fp != F:
        x_flat = jnp.pad(x_flat, ((0, Bp - B), (0, Fp - F)))

    grid = (Bp // tm, Fp // tk)

    cost = pl.CostEstimate(
        flops=2 * Bp * Fp * Dp + 2 * Bp * Dp * Ep,
        transcendentals=2 * Bp,
        bytes_accessed=(x_flat.size * 4
                        + params["w_cnn_t"].size * 2 * (Bp // tm)   # re-streamed per batch tile
                        + params["w_fc_t"].size * 2
                        + params["b_fc"].size * 4
                        + Bp * Ep * 4),
    )

    out = pl.pallas_call(
        encoder_kernel,
        out_shape=jax.ShapeDtypeStruct((Bp, Ep), jnp.float32),
        grid_spec=pltpu.PrefetchScalarGridSpec(
            num_scalar_prefetch=0,
            grid=grid,
            in_specs=[
                pl.BlockSpec((tm, tk), lambda m, k: (m, k)),       # x tile (f32)
                pl.BlockSpec((tk, Dp), lambda m, k: (k, 0)),       # w_cnn K-slice (bf16)
                pl.BlockSpec((Dp, Ep), lambda m, k: (0, 0),        # fc weight: resident,
                             pipeline_mode=pl.Buffered(1)),        #   single-buffered
                pl.BlockSpec((1, Ep), lambda m, k: (0, 0),         # fc bias: resident,
                             pipeline_mode=pl.Buffered(1)),        #   single-buffered
            ],
            out_specs=pl.BlockSpec((tm, Ep), lambda m, k: (m, 0)),
            scratch_shapes=[pltpu.VMEM((tm, Dp), jnp.float32)],
        ),
        compiler_params=pltpu.CompilerParams(
            dimension_semantics=("parallel", "arbitrary"),
            vmem_limit_bytes=40 * 1024 * 1024,
        ),
        cost_estimate=cost,
    )(x_flat, params["w_cnn_t"], params["w_fc_t"], params["b_fc"])

    return out[:B, :E]


def _reference(x_nchw, w_cnn, w_fc, b_fc):
    """Pure-JAX reference with the same bf16-input / f32-accumulate policy."""
    B = x_nchw.shape[0]
    x = x_nchw.reshape(B, -1).astype(MXU_DTYPE)
    w = jnp.asarray(w_cnn, jnp.float32).astype(MXU_DTYPE)
    f = jnp.dot(x, w.T, preferred_element_type=jnp.float32)
    f = jnp.maximum(f, 0.0)
    f = f * jax.lax.rsqrt(jnp.maximum(jnp.sum(f * f, axis=1, keepdims=True), _EPS))
    wf = jnp.asarray(w_fc, jnp.float32).astype(MXU_DTYPE)
    e = jnp.dot(f.astype(MXU_DTYPE), wf.T,
                preferred_element_type=jnp.float32) + b_fc
    e = e * jax.lax.rsqrt(jnp.maximum(jnp.sum(e * e, axis=1, keepdims=True), _EPS))
    return e


if __name__ == "__main__":
    # small shapes consistent with the module's forward (NCHW image -> embed)
    B, C, H, W = 2, 4, 16, 16
    CNN_DIM, EMBED = 64, 32      # scaled-down D_cnn (VGG: 4096) and embed_size

    key = jax.random.PRNGKey(0)
    k_x, k_cnn, k_fc = jax.random.split(key, 3)

    x = jax.random.normal(k_x, (B, C, H, W), jnp.float32)

    # deterministic backbone-proxy weight (stands in for pretrained VGG19)
    F = C * H * W
    w_cnn = 0.02 * jax.random.normal(k_cnn, (CNN_DIM, F), jnp.float32)

    # fc init exactly as EncoderImageFull.init_weights(): Xavier uniform, bias=0
    r = np.sqrt(6.0) / np.sqrt(CNN_DIM + EMBED)
    w_fc = jax.random.uniform(k_fc, (EMBED, CNN_DIM), jnp.float32, -r, r)
    b_fc = jnp.zeros((EMBED,), jnp.float32)

    params = prepare_params(w_cnn, w_fc, b_fc)       # one-time weight prep
    out = encoder_image_full(x, params)
    out = jax.block_until_ready(out)

    ref = _reference(x, w_cnn, w_fc, b_fc)
    assert out.shape == (B, EMBED)
    np.testing.assert_allclose(np.asarray(out), np.asarray(ref),
                               rtol=2e-3, atol=1e-3)

    print("KERNEL_OK")
</pallas_src>

<mosaic_0001>
module attributes {stable_mosaic.version = 11 : i64} {
  func.func @encoder_kernel(%arg0: i32, %arg1: i32, %arg2: memref<8x1024xf32, #tpu.memory_space<vmem>>, %arg3: memref<1024x128xbf16, #tpu.memory_space<vmem>>, %arg4: memref<128x128xbf16, #tpu.memory_space<vmem>>, %arg5: memref<1x128xf32, #tpu.memory_space<vmem>>, %arg6: memref<8x128xf32, #tpu.memory_space<vmem>>, %arg7: memref<8x128xf32, #tpu.memory_space<vmem>>) attributes {dimension_semantics = [#tpu.dimension_semantics<parallel>, #tpu.dimension_semantics<arbitrary>], iteration_bounds = array<i64: 1, 1>, scalar_prefetch = 0 : i64, scratch_operands = 1 : i64, tpu.core_type = #tpu.core_type<tc>, window_params = [{transform_indices = @transform_0, window_bounds = array<i64: 8, 1024>}, {transform_indices = @transform_1, window_bounds = array<i64: 1024, 128>}, {pipeline_mode = #tpu.pipeline_mode<synchronous>, transform_indices = @transform_2, window_bounds = array<i64: 128, 128>}, {pipeline_mode = #tpu.pipeline_mode<synchronous>, transform_indices = @transform_3, window_bounds = array<i64: 1, 128>}, {transform_indices = @transform_4, window_bounds = array<i64: 8, 128>}]} {
    %c0_i32 = arith.constant 0 : i32
    %0 = arith.cmpi eq, %arg1, %c0_i32 : i32
    %1 = arith.extui %0 : i1 to i32
    %c0_i32_0 = arith.constant 0 : i32
    %2 = arith.cmpi ne, %1, %c0_i32_0 : i32
    scf.if %2 {
      %cst_10 = arith.constant 0.000000e+00 : f32
      %13 = vector.broadcast %cst_10 : f32 to vector<8x128xf32>
      %c0_11 = arith.constant 0 : index
      %c0_12 = arith.constant 0 : index
      %14 = vector.load %arg7[%c0_11, %c0_12] : memref<8x128xf32, #tpu.memory_space<vmem>>, vector<8x128xf32>
      tpu.vector_store %arg7[%c0_11, %c0_12], %13 {strides = array<i32>} : memref<8x128xf32, #tpu.memory_space<vmem>>, vector<8x128xf32>,
    } else {
    }
    %c0 = arith.constant 0 : index
    %c0_1 = arith.constant 0 : index
    %3 = vector.load %arg7[%c0, %c0_1] : memref<8x128xf32, #tpu.memory_space<vmem>>, vector<8x128xf32>
    %c0_2 = arith.constant 0 : index
    %c0_3 = arith.constant 0 : index
    %4 = vector.load %arg2[%c0_2, %c0_3] : memref<8x1024xf32, #tpu.memory_space<vmem>>, vector<8x1024xf32>
    %5 = arith.truncf %4 : vector<8x1024xf32> to vector<8x1024xbf16>
    %c0_4 = arith.constant 0 : index
    %c0_5 = arith.constant 0 : index
    %6 = vector.load %arg3[%c0_4, %c0_5] : memref<1024x128xbf16, #tpu.memory_space<vmem>>, vector<1024x128xbf16>
    %cst = arith.constant dense<0.000000e+00> : vector<8x128xf32>
    %7 = tpu.matmul %5, %6, %cst {dimension_numbers = #tpu.dot_dimension_numbers<[1], [0], [0], [1], [0, 0, 1, 1], [], []>} : vector<8x1024xbf16>, vector<1024x128xbf16>, vector<8x128xf32> -> vector<8x128xf32>
    %8 = arith.addf %3, %7 : vector<8x128xf32>
    %c0_6 = arith.constant 0 : index
    %c0_7 = arith.constant 0 : index
    %9 = vector.load %arg7[%c0_6, %c0_7] : memref<8x128xf32, #tpu.memory_space<vmem>>, vector<8x128xf32>
    tpu.vector_store %arg7[%c0_6, %c0_7], %8 {strides = array<i32>} : memref<8x128xf32, #tpu.memory_space<vmem>>, vector<8x128xf32>,
    %c0_i32_8 = arith.constant 0 : i32
    %10 = arith.cmpi eq, %arg1, %c0_i32_8 : i32
    %11 = arith.extui %10 : i1 to i32
    %c0_i32_9 = arith.constant 0 : i32
    %12 = arith.cmpi ne, %11, %c0_i32_9 : i32
    scf.if %12 {
      %c0_10 = arith.constant 0 : index
      %c0_11 = arith.constant 0 : index
      %13 = vector.load %arg7[%c0_10, %c0_11] : memref<8x128xf32, #tpu.memory_space<vmem>>, vector<8x128xf32>
      %cst_12 = arith.constant 0.000000e+00 : f32
      %14 = vector.broadcast %cst_12 : f32 to vector<8x128xf32>
      %15 = arith.maximumf %13, %14 : vector<8x128xf32>
      %16 = arith.mulf %15, %15 : vector<8x128xf32>
      %cst_13 = arith.constant dense<0.000000e+00> : vector<8xf32>
      %17 = vector.multi_reduction <add>, %16, %cst_13 [1] : vector<8x128xf32> to vector<8xf32>
      %18 = vector.shape_cast %17 : vector<8xf32> to vector<8x1xf32>
      %cst_14 = arith.constant 1.000000e-30 : f32
      %19 = vector.broadcast %cst_14 : f32 to vector<8x1xf32>
      %20 = arith.maximumf %18, %19 : vector<8x1xf32>
      %21 = math.rsqrt %20 : vector<8x1xf32>
      %22 = vector.broadcast %21 : vector<8x1xf32> to vector<8x128xf32>
      %23 = arith.mulf %15, %22 : vector<8x128xf32>
      %24 = arith.truncf %23 : vector<8x128xf32> to vector<8x128xbf16>
      %c0_15 = arith.constant 0 : index
      %c0_16 = arith.constant 0 : index
      %25 = vector.load %arg4[%c0_15, %c0_16] : memref<128x128xbf16, #tpu.memory_space<vmem>>, vector<128x128xbf16>
      %cst_17 = arith.constant dense<0.000000e+00> : vector<8x128xf32>
      %26 = tpu.matmul %24, %25, %cst_17 {dimension_numbers = #tpu.dot_dimension_numbers<[1], [0], [0], [1], [0, 0, 1, 1], [], []>} : vector<8x128xbf16>, vector<128x128xbf16>, vector<8x128xf32> -> vector<8x128xf32>
      %c0_18 = arith.constant 0 : index
      %c0_19 = arith.constant 0 : index
      %27 = vector.load %arg5[%c0_18, %c0_19] : memref<1x128xf32, #tpu.memory_space<vmem>>, vector<1x128xf32>
      %28 = vector.broadcast %27 : vector<1x128xf32> to vector<8x128xf32>
      %29 = arith.addf %26, %28 : vector<8x128xf32>
      %30 = arith.mulf %29, %29 : vector<8x128xf32>
      %cst_20 = arith.constant dense<0.000000e+00> : vector<8xf32>
      %31 = vector.multi_reduction <add>, %30, %cst_20 [1] : vector<8x128xf32> to vector<8xf32>
      %32 = vector.shape_cast %31 : vector<8xf32> to vector<8x1xf32>
      %cst_21 = arith.constant 1.000000e-30 : f32
      %33 = vector.broadcast %cst_21 : f32 to vector<8x1xf32>
      %34 = arith.maximumf %32, %33 : vector<8x1xf32>
      %35 = math.rsqrt %34 : vector<8x1xf32>
      %36 = vector.broadcast %35 : vector<8x1xf32> to vector<8x128xf32>
      %37 = arith.mulf %29, %36 : vector<8x128xf32>
      %c0_22 = arith.constant 0 : index
      %c0_23 = arith.constant 0 : index
      %38 = vector.load %arg6[%c0_22, %c0_23] : memref<8x128xf32, #tpu.memory_space<vmem>>, vector<8x128xf32>
      tpu.vector_store %arg6[%c0_22, %c0_23], %37 {strides = array<i32>} : memref<8x128xf32, #tpu.memory_space<vmem>>, vector<8x128xf32>,
    } else {
    }
    return
  }
  func.func @transform_0(%arg0: i32, %arg1: i32) -> (i32, i32) {
    %c0_i32 = arith.constant 0 : i32
    return %arg0, %arg1 : i32, i32
  }
  func.func @transform_1(%arg0: i32, %arg1: i32) -> (i32, i32) {
    %c0_i32 = arith.constant 0 : i32
    %c0_i32_0 = arith.constant 0 : i32
    return %arg1, %c0_i32 : i32, i32
  }
  func.func @transform_2(%arg0: i32, %arg1: i32) -> (i32, i32) {
    %c0_i32 = arith.constant 0 : i32
    %c0_i32_0 = arith.constant 0 : i32
    %c0_i32_1 = arith.constant 0 : i32
    return %c0_i32, %c0_i32_0 : i32, i32
  }
  func.func @transform_3(%arg0: i32, %arg1: i32) -> (i32, i32) {
    %c0_i32 = arith.constant 0 : i32
    %c0_i32_0 = arith.constant 0 : i32
    %c0_i32_1 = arith.constant 0 : i32
    return %c0_i32, %c0_i32_0 : i32, i32
  }
  func.func @transform_4(%arg0: i32, %arg1: i32) -> (i32, i32) {
    %c0_i32 = arith.constant 0 : i32
    %c0_i32_0 = arith.constant 0 : i32
    return %arg0, %c0_i32 : i32, i32
  }
}

</mosaic_0001>

<llo_original>
// kernel: tpu_custom_call.1
$region0: #{tpu_custom_call.1}
  #allocation0 [shape = 'u32[]', space=smem, size = 0x4, offset = 0x4, fixed_abs, tag = 'smem constant byte address 0x4 - core index']
  #allocation1 [shape = 'u32[72,128]{1,0:T(1,128)}', space=vmem, size = 0x9000, scoped, tag = 'internal scratch']
  #allocation2 [shape = 'f32[8,128]{1,0:T(8,128)}', space=vmem, size = 0x1000, scoped, tag = 'scratch operand']
  %s0 = inlined_call_operand.hbm [shape: f32[8,1024], index: 0, kind: input, shape index: {}]
  %s1 = inlined_call_operand.hbm [shape: bf16[1024,128], index: 1, kind: input, shape index: {}]
  %s2 = inlined_call_operand.hbm [shape: bf16[128,128], index: 2, kind: input, shape index: {}]
  %s3 = inlined_call_operand.vmem [shape: f32[1,128], index: 3, kind: input, shape index: {}]
  %s4 = inlined_call_operand.hbm [shape: f32[8,128], index: 4, kind: output, shape index: {}]
  %s5 = sld [smem:[#allocation0]]
  $region46: #{tpu_custom_call.1} parent=0
    _
  %s7 = ssub.s32 1, %s5
  %s8 = scalar_select 0, %s7, %s5
  $region1: #{tpu_custom_call.1} parent=0
    #allocation3 [shape = 'u8[32768]{0}', space=vmem, size = 0x8000, scoped, tag = 'input window, operand 0, single buffered']
    #allocation4 [shape = 's32[1]{0}', space=sflag, size = 0x4, scoped, tag = 'scoped memory for tpu_custom_call.1']
    #allocation5 [shape = 's32[1]{0}', space=sflag, size = 0x4, scoped, tag = 'scoped memory for tpu_custom_call.1']
    #allocation6 [shape = 'u8[262144]{0}', space=vmem, size = 0x40000, scoped, tag = 'input window, operand 1, single buffered']
    #allocation7 [shape = 's32[1]{0}', space=sflag, size = 0x4, scoped, tag = 'scoped memory for tpu_custom_call.1']
    #allocation8 [shape = 'u8[32768]{0}', space=vmem, size = 0x8000, scoped, tag = 'input window, operand 2, single buffered']
    #allocation9 [shape = 'u8[4096]{0}', space=vmem, size = 0x1000, scoped, tag = 'output window, operand 0, single buffered']
    %9 = vsyncpa [#allocation4], 0
    %10 = vsyncpa [#allocation7], 0
    %11 = vsyncpa [#allocation5], 0
    // Predicated region
    $region2: #{tpu_custom_call.1} parent=1 // pred_check
      _
    $region3: #{tpu_custom_call.1} parent=1 // pred_check_branch
      %13 = sbr.rel (0) target = $region5
    $region4: #{tpu_custom_call.1} parent=1 // pred_region
      %15 = vsyncadd [#allocation4], 0
      %s17 = sshll.u32 %s0, 4
      %s18 = int_to_ptr.hbm [resolvable:$true] %s17
      %s19 = sshll.u32 [#allocation3], 4
      %s20 = int_to_ptr.vmem [resolvable:$true] %s19
      %22 = dma.hbm_to_vmem [thread:$0]  %s18, 1024, %s20, [#allocation4]
    $region5: #{tpu_custom_call.1} parent=1 // pred_fallthru
      _
    // Predicated region
    $region6: #{tpu_custom_call.1} parent=1 // pred_check
      _
    $region7: #{tpu_custom_call.1} parent=1 // pred_check_branch
      %24 = sbr.rel (0) target = $region9
    $region8: #{tpu_custom_call.1} parent=1 // pred_region
      %26 = vsyncadd [#allocation7], 0
      %s27 = sshll.u32 %s1, 4
      %s28 = int_to_ptr.hbm [resolvable:$true] %s27
      %s29 = sshll.u32 [#allocation6], 4
      %s30 = int_to_ptr.vmem [resolvable:$true] %s29
      %35 = dma.hbm_to_vmem [thread:$0]  %s28, 8192, %s30, [#allocation7], 64, 64, 4
    $region9: #{tpu_custom_call.1} parent=1 // pred_fallthru
      _
    // Predicated region
    $region10: #{tpu_custom_call.1} parent=1 // pred_check
      _
    $region11: #{tpu_custom_call.1} parent=1 // pred_check_branch
      %37 = sbr.rel (0) target = $region13
    $region12: #{tpu_custom_call.1} parent=1 // pred_region
      %39 = vsyncadd [#allocation7], 0
      %s40 = sshll.u32 %s2, 4
      %s41 = int_to_ptr.hbm [resolvable:$true] %s40
      %s42 = sshll.u32 [#allocation8], 4
      %s43 = int_to_ptr.vmem [resolvable:$true] %s42
      %48 = dma.hbm_to_vmem [thread:$0]  %s41, 1024, %s43, [#allocation7], 64, 64, 4
    $region13: #{tpu_custom_call.1} parent=1 // pred_fallthru
      _
    // Predicated region
    $region14: #{tpu_custom_call.1} parent=1 // pred_check
      _
    $region15: #{tpu_custom_call.1} parent=1 // pred_check_branch
      %50 = sbr.rel (0) target = $region17
    $region16: #{tpu_custom_call.1} parent=1 // pred_region
      _
    $region17: #{tpu_custom_call.1} parent=1 // pred_fallthru
      _
    // Predicated region
    $region18: #{tpu_custom_call.1} parent=1 // pred_check
      _
    $region19: #{tpu_custom_call.1} parent=1 // pred_check_branch
      %52 = sbr.rel (0) target = $region21
    $region20: #{tpu_custom_call.1} parent=1 // pred_region
      %54 = dma.done [#allocation4], 1024
    $region21: #{tpu_custom_call.1} parent=1 // pred_fallthru
      _
    // Predicated region
    $region22: #{tpu_custom_call.1} parent=1 // pred_check
      _
    $region23: #{tpu_custom_call.1} parent=1 // pred_check_branch
      %56 = sbr.rel (0) target = $region25
    $region24: #{tpu_custom_call.1} parent=1 // pred_region
      %58 = dma.done [#allocation7], 8192
    $region25: #{tpu_custom_call.1} parent=1 // pred_fallthru
      _
    // Predicated region
    $region26: #{tpu_custom_call.1} parent=1 // pred_check
      _
    $region27: #{tpu_custom_call.1} parent=1 // pred_check_branch
      %60 = sbr.rel (0) target = $region29
    $region28: #{tpu_custom_call.1} parent=1 // pred_region
      %62 = dma.done [#allocation7], 1024
    $region29: #{tpu_custom_call.1} parent=1 // pred_fallthru
      _
    %p63 = scmp.eq.s32.totalorder 0, 0
    // Predicated region
    $region30: #{tpu_custom_call.1} parent=1 // pred_check
      %p64 = pneg %p63
    $region31: #{tpu_custom_call.1} parent=1 // pred_check_branch
      %66 = sbr.rel (%p64) target = $region33
    $region32: #{tpu_custom_call.1} parent=1 // pred_region
      %67 = vst [vmem:[#allocation2] sm:$0xff] 0.0
    $region33: #{tpu_custom_call.1} parent=1 // pred_fallthru
      _
    %v68 = vld [vmem:[#allocation2] sm:$0xff]
    %v69 = vld [vmem:[#allocation3] sm:$0xff]
    %v70 = vld [vmem:[#allocation3 + $0x8] sm:$0xff]
    %v71 = vld [vmem:[#allocation3 + $0x10] sm:$0xff]
    %v72 = vld [vmem:[#allocation3 + $0x18] sm:$0xff]
    %v73 = vld [vmem:[#allocation3 + $0x20] sm:$0xff]
    %v74 = vld [vmem:[#allocation3 + $0x28] sm:$0xff]
    %v75 = vld [vmem:[#allocation3 + $0x30] sm:$0xff]
    %v76 = vld [vmem:[#allocation3 + $0x38] sm:$0xff]
    %v77 = vpack.c.bf16 %v69, %v69
    %v78 = vpack.c.bf16 %v70, %v70
    %v79 = vpack.c.bf16 %v71, %v71
    %v80 = vpack.c.bf16 %v72, %v72
    %v81 = vpack.c.bf16 %v73, %v73
    %v82 = vpack.c.bf16 %v74, %v74
    %v83 = vpack.c.bf16 %v75, %v75
    %v84 = vpack.c.bf16 %v76, %v76
    %v85 = vld [vmem:[#allocation6] sm:$0xf]
    %v86 = vld [vmem:[#allocation6 + $0x4] sm:$0xf]
    %v87 = vld [vmem:[#allocation6 + $0x8] sm:$0xf]
    %v88 = vld [vmem:[#allocation6 + $0xc] sm:$0xf]
    %v89 = vld [vmem:[#allocation6 + $0x10] sm:$0xf]
    %v90 = vld [vmem:[#allocation6 + $0x14] sm:$0xf]
    %v91 = vld [vmem:[#allocation6 + $0x18] sm:$0xf]
    %v92 = vld [vmem:[#allocation6 + $0x1c] sm:$0xf]
    %v93 = vld [vmem:[#allocation6 + $0x20] sm:$0xf]
    %v94 = vld [vmem:[#allocation6 + $0x24] sm:$0xf]
    %v95 = vld [vmem:[#allocation6 + $0x28] sm:$0xf]
    %v96 = vld [vmem:[#allocation6 + $0x2c] sm:$0xf]
    %v97 = vld [vmem:[#allocation6 + $0x30] sm:$0xf]
    %v98 = vld [vmem:[#allocation6 + $0x34] sm:$0xf]
    %v99 = vld [vmem:[#allocation6 + $0x38] sm:$0xf]
    %v100 = vld [vmem:[#allocation6 + $0x3c] sm:$0xf]
    %v101 = vld [vmem:[#allocation6 + $0x40] sm:$0xf]
    %v102 = vld [vmem:[#allocation6 + $0x44] sm:$0xf]
    %v103 = vld [vmem:[#allocation6 + $0x48] sm:$0xf]
    %v104 = vld [vmem:[#allocation6 + $0x4c] sm:$0xf]
    %v105 = vld [vmem:[#allocation6 + $0x50] sm:$0xf]
    %v106 = vld [vmem:[#allocation6 + $0x54] sm:$0xf]
    %v107 = vld [vmem:[#allocation6 + $0x58] sm:$0xf]
    %v108 = vld [vmem:[#allocation6 + $0x5c] sm:$0xf]
    %v109 = vld [vmem:[#allocation6 + $0x60] sm:$0xf]
    %v110 = vld [vmem:[#allocation6 + $0x64] sm:$0xf]
    %v111 = vld [vmem:[#allocation6 + $0x68] sm:$0xf]
    %v112 = vld [vmem:[#allocation6 + $0x6c] sm:$0xf]
    %v113 = vld [vmem:[#allocation6 + $0x70] sm:$0xf]
    %v114 = vld [vmem:[#allocation6 + $0x74] sm:$0xf]
    %v115 = vld [vmem:[#allocation6 + $0x78] sm:$0xf]
    %v116 = vld [vmem:[#allocation6 + $0x7c] sm:$0xf]
    %v117 = vld [vmem:[#allocation6 + $0x80] sm:$0xf]
    %v118 = vld [vmem:[#allocation6 + $0x84] sm:$0xf]
    %v119 = vld [vmem:[#allocation6 + $0x88] sm:$0xf]
    %v120 = vld [vmem:[#allocation6 + $0x8c] sm:$0xf]
    %v121 = vld [vmem:[#allocation6 + $0x90] sm:$0xf]
    %v122 = vld [vmem:[#allocation6 + $0x94] sm:$0xf]
    %v123 = vld [vmem:[#allocation6 + $0x98] sm:$0xf]
    %v124 = vld [vmem:[#allocation6 + $0x9c] sm:$0xf]
    %v125 = vld [vmem:[#allocation6 + $0xa0] sm:$0xf]
    %v126 = vld [vmem:[#allocation6 + $0xa4] sm:$0xf]
    %v127 = vld [vmem:[#allocation6 + $0xa8] sm:$0xf]
    %v128 = vld [vmem:[#allocation6 + $0xac] sm:$0xf]
    %v129 = vld [vmem:[#allocation6 + $0xb0] sm:$0xf]
    %v130 = vld [vmem:[#allocation6 + $0xb4] sm:$0xf]
    %v131 = vld [vmem:[#allocation6 + $0xb8] sm:$0xf]
    %v132 = vld [vmem:[#allocation6 + $0xbc] sm:$0xf]
    %v133 = vld [vmem:[#allocation6 + $0xc0] sm:$0xf]
    %v134 = vld [vmem:[#allocation6 + $0xc4] sm:$0xf]
    %v135 = vld [vmem:[#allocation6 + $0xc8] sm:$0xf]
    %v136 = vld [vmem:[#allocation6 + $0xcc] sm:$0xf]
    %v137 = vld [vmem:[#allocation6 + $0xd0] sm:$0xf]
    %v138 = vld [vmem:[#allocation6 + $0xd4] sm:$0xf]
    %v139 = vld [vmem:[#allocation6 + $0xd8] sm:$0xf]
    %v140 = vld [vmem:[#allocation6 + $0xdc] sm:$0xf]
    %v141 = vld [vmem:[#allocation6 + $0xe0] sm:$0xf]
    %v142 = vld [vmem:[#allocation6 + $0xe4] sm:$0xf]
    %v143 = vld [vmem:[#allocation6 + $0xe8] sm:$0xf]
    %v144 = vld [vmem:[#allocation6 + $0xec] sm:$0xf]
    %v145 = vld [vmem:[#allocation6 + $0xf0] sm:$0xf]
    %v146 = vld [vmem:[#allocation6 + $0xf4] sm:$0xf]
    %v147 = vld [vmem:[#allocation6 + $0xf8] sm:$0xf]
    %v148 = vld [vmem:[#allocation6 + $0xfc] sm:$0xf]
    %v149 = vld [vmem:[#allocation6 + $0x100] sm:$0xf]
    %v150 = vld [vmem:[#allocation6 + $0x104] sm:$0xf]
    %v151 = vld [vmem:[#allocation6 + $0x108] sm:$0xf]
    %v152 = vld [vmem:[#allocation6 + $0x10c] sm:$0xf]
    %v153 = vld [vmem:[#allocation6 + $0x110] sm:$0xf]
    %v154 = vld [vmem:[#allocation6 + $0x114] sm:$0xf]
    %v155 = vld [vmem:[#allocation6 + $0x118] sm:$0xf]
    %v156 = vld [vmem:[#allocation6 + $0x11c] sm:$0xf]
    %v157 = vld [vmem:[#allocation6 + $0x120] sm:$0xf]
    %v158 = vld [vmem:[#allocation6 + $0x124] sm:$0xf]
    %v159 = vld [vmem:[#allocation6 + $0x128] sm:$0xf]
    %v160 = vld [vmem:[#allocation6 + $0x12c] sm:$0xf]
    %v161 = vld [vmem:[#allocation6 + $0x130] sm:$0xf]
    %v162 = vld [vmem:[#allocation6 + $0x134] sm:$0xf]
    %v163 = vld [vmem:[#allocation6 + $0x138] sm:$0xf]
    %v164 = vld [vmem:[#allocation6 + $0x13c] sm:$0xf]
    %v165 = vld [vmem:[#allocation6 + $0x140] sm:$0xf]
    %v166 = vld [vmem:[#allocation6 + $0x144] sm:$0xf]
    %v167 = vld [vmem:[#allocation6 + $0x148] sm:$0xf]
    %v168 = vld [vmem:[#allocation6 + $0x14c] sm:$0xf]
    %v169 = vld [vmem:[#allocation6 + $0x150] sm:$0xf]
    %v170 = vld [vmem:[#allocation6 + $0x154] sm:$0xf]
    %v171 = vld [vmem:[#allocation6 + $0x158] sm:$0xf]
    %v172 = vld [vmem:[#allocation6 + $0x15c] sm:$0xf]
    %v173 = vld [vmem:[#allocation6 + $0x160] sm:$0xf]
    %v174 = vld [vmem:[#allocation6 + $0x164] sm:$0xf]
    %v175 = vld [vmem:[#allocation6 + $0x168] sm:$0xf]
    %v176 = vld [vmem:[#allocation6 + $0x16c] sm:$0xf]
    %v177 = vld [vmem:[#allocation6 + $0x170] sm:$0xf]
    %v178 = vld [vmem:[#allocation6 + $0x174] sm:$0xf]
    %v179 = vld [vmem:[#allocation6 + $0x178] sm:$0xf]
    %v180 = vld [vmem:[#allocation6 + $0x17c] sm:$0xf]
    %v181 = vld [vmem:[#allocation6 + $0x180] sm:$0xf]
    %v182 = vld [vmem:[#allocation6 + $0x184] sm:$0xf]
    %v183 = vld [vmem:[#allocation6 + $0x188] sm:$0xf]
    %v184 = vld [vmem:[#allocation6 + $0x18c] sm:$0xf]
    %v185 = vld [vmem:[#allocation6 + $0x190] sm:$0xf]
    %v186 = vld [vmem:[#allocation6 + $0x194] sm:$0xf]
    %v187 = vld [vmem:[#allocation6 + $0x198] sm:$0xf]
    %v188 = vld [vmem:[#allocation6 + $0x19c] sm:$0xf]
    %v189 = vld [vmem:[#allocation6 + $0x1a0] sm:$0xf]
    %v190 = vld [vmem:[#allocation6 + $0x1a4] sm:$0xf]
    %v191 = vld [vmem:[#allocation6 + $0x1a8] sm:$0xf]
    %v192 = vld [vmem:[#allocation6 + $0x1ac] sm:$0xf]
    %v193 = vld [vmem:[#allocation6 + $0x1b0] sm:$0xf]
    %v194 = vld [vmem:[#allocation6 + $0x1b4] sm:$0xf]
    %v195 = vld [vmem:[#allocation6 + $0x1b8] sm:$0xf]
    %v196 = vld [vmem:[#allocation6 + $0x1bc] sm:$0xf]
    %v197 = vld [vmem:[#allocation6 + $0x1c0] sm:$0xf]
    %v198 = vld [vmem:[#allocation6 + $0x1c4] sm:$0xf]
    %v199 = vld [vmem:[#allocation6 + $0x1c8] sm:$0xf]
    %v200 = vld [vmem:[#allocation6 + $0x1cc] sm:$0xf]
    %v201 = vld [vmem:[#allocation6 + $0x1d0] sm:$0xf]
    %v202 = vld [vmem:[#allocation6 + $0x1d4] sm:$0xf]
    %v203 = vld [vmem:[#allocation6 + $0x1d8] sm:$0xf]
    %v204 = vld [vmem:[#allocation6 + $0x1dc] sm:$0xf]
    %v205 = vld [vmem:[#allocation6 + $0x1e0] sm:$0xf]
    %v206 = vld [vmem:[#allocation6 + $0x1e4] sm:$0xf]
    %v207 = vld [vmem:[#allocation6 + $0x1e8] sm:$0xf]
    %v208 = vld [vmem:[#allocation6 + $0x1ec] sm:$0xf]
    %v209 = vld [vmem:[#allocation6 + $0x1f0] sm:$0xf]
    %v210 = vld [vmem:[#allocation6 + $0x1f4] sm:$0xf]
    %v211 = vld [vmem:[#allocation6 + $0x1f8] sm:$0xf]
    %v212 = vld [vmem:[#allocation6 + $0x1fc] sm:$0xf]
    %v341 = vunpack.c.l.b16 %v85
    %v342 = vunpack.c.l.b16 %v86
    %v343 = vunpack.c.l.b16 %v87
    %v344 = vunpack.c.l.b16 %v88
    %v345 = vunpack.c.l.b16 %v89
    %v346 = vunpack.c.l.b16 %v90
    %v347 = vunpack.c.l.b16 %v91
    %v348 = vunpack.c.l.b16 %v92
    %v349 = vunpack.c.l.b16 %v93
    %v350 = vunpack.c.l.b16 %v94
    %v351 = vunpack.c.l.b16 %v95
    %v352 = vunpack.c.l.b16 %v96
    %v353 = vunpack.c.l.b16 %v97
    %v354 = vunpack.c.l.b16 %v98
    %v355 = vunpack.c.l.b16 %v99
    %v356 = vunpack.c.l.b16 %v100
    %v357 = vunpack.c.l.b16 %v101
    %v358 = vunpack.c.l.b16 %v102
    %v359 = vunpack.c.l.b16 %v103
    %v360 = vunpack.c.l.b16 %v104
    %v361 = vunpack.c.l.b16 %v105
    %v362 = vunpack.c.l.b16 %v106
    %v363 = vunpack.c.l.b16 %v107
    %v364 = vunpack.c.l.b16 %v108
    %v365 = vunpack.c.l.b16 %v109
    %v366 = vunpack.c.l.b16 %v110
    %v367 = vunpack.c.l.b16 %v111
    %v368 = vunpack.c.l.b16 %v112
    %v369 = vunpack.c.l.b16 %v113
    %v370 = vunpack.c.l.b16 %v114
    %v371 = vunpack.c.l.b16 %v115
    %v372 = vunpack.c.l.b16 %v116
    %v373 = vunpack.c.l.b16 %v117
    %v374 = vunpack.c.l.b16 %v118
    %v375 = vunpack.c.l.b16 %v119
    %v376 = vunpack.c.l.b16 %v120
    %v377 = vunpack.c.l.b16 %v121
    %v378 = vunpack.c.l.b16 %v122
    %v379 = vunpack.c.l.b16 %v123
    %v380 = vunpack.c.l.b16 %v124
    %v381 = vunpack.c.l.b16 %v125
    %v382 = vunpack.c.l.b16 %v126
    %v383 = vunpack.c.l.b16 %v127
    %v384 = vunpack.c.l.b16 %v128
    %v385 = vunpack.c.l.b16 %v129
    %v386 = vunpack.c.l.b16 %v130
    %v387 = vunpack.c.l.b16 %v131
    %v388 = vunpack.c.l.b16 %v132
    %v389 = vunpack.c.l.b16 %v133
    %v390 = vunpack.c.l.b16 %v134
    %v391 = vunpack.c.l.b16 %v135
    %v392 = vunpack.c.l.b16 %v136
    %v393 = vunpack.c.l.b16 %v137
    %v394 = vunpack.c.l.b16 %v138
    %v395 = vunpack.c.l.b16 %v139
    %v396 = vunpack.c.l.b16 %v140
    %v397 = vunpack.c.l.b16 %v141
    %v398 = vunpack.c.l.b16 %v142
    %v399 = vunpack.c.l.b16 %v143
    %v400 = vunpack.c.l.b16 %v144
    %v401 = vunpack.c.l.b16 %v145
    %v402 = vunpack.c.l.b16 %v146
    %v403 = vunpack.c.l.b16 %v147
    %v404 = vunpack.c.l.b16 %v148
    %v405 = vunpack.c.l.b16 %v149
    %v406 = vunpack.c.l.b16 %v150
    %v407 = vunpack.c.l.b16 %v151
    %v408 = vunpack.c.l.b16 %v152
    %v409 = vunpack.c.l.b16 %v153
    %v410 = vunpack.c.l.b16 %v154
    %v411 = vunpack.c.l.b16 %v155
    %v412 = vunpack.c.l.b16 %v156
    %v413 = vunpack.c.l.b16 %v157
    %v414 = vunpack.c.l.b16 %v158
    %v415 = vunpack.c.l.b16 %v159
    %v416 = vunpack.c.l.b16 %v160
    %v417 = vunpack.c.l.b16 %v161
    %v418 = vunpack.c.l.b16 %v162
    %v419 = vunpack.c.l.b16 %v163
    %v420 = vunpack.c.l.b16 %v164
    %v421 = vunpack.c.l.b16 %v165
    %v422 = vunpack.c.l.b16 %v166
    %v423 = vunpack.c.l.b16 %v167
    %v424 = vunpack.c.l.b16 %v168
    %v425 = vunpack.c.l.b16 %v169
    %v426 = vunpack.c.l.b16 %v170
    %v427 = vunpack.c.l.b16 %v171
    %v428 = vunpack.c.l.b16 %v172
    %v429 = vunpack.c.l.b16 %v173
    %v430 = vunpack.c.l.b16 %v174
    %v431 = vunpack.c.l.b16 %v175
    %v432 = vunpack.c.l.b16 %v176
    %v433 = vunpack.c.l.b16 %v177
    %v434 = vunpack.c.l.b16 %v178
    %v435 = vunpack.c.l.b16 %v179
    %v436 = vunpack.c.l.b16 %v180
    %v437 = vunpack.c.l.b16 %v181
    %v438 = vunpack.c.l.b16 %v182
    %v439 = vunpack.c.l.b16 %v183
    %v440 = vunpack.c.l.b16 %v184
    %v441 = vunpack.c.l.b16 %v185
    %v442 = vunpack.c.l.b16 %v186
    %v443 = vunpack.c.l.b16 %v187
    %v444 = vunpack.c.l.b16 %v188
    %v445 = vunpack.c.l.b16 %v189
    %v446 = vunpack.c.l.b16 %v190
    %v447 = vunpack.c.l.b16 %v191
    %v448 = vunpack.c.l.b16 %v192
    %v449 = vunpack.c.l.b16 %v193
    %v450 = vunpack.c.l.b16 %v194
    %v451 = vunpack.c.l.b16 %v195
    %v452 = vunpack.c.l.b16 %v196
    %v453 = vunpack.c.l.b16 %v197
    %v454 = vunpack.c.l.b16 %v198
    %v455 = vunpack.c.l.b16 %v199
    %v456 = vunpack.c.l.b16 %v200
    %v457 = vunpack.c.l.b16 %v201
    %v458 = vunpack.c.l.b16 %v202
    %v459 = vunpack.c.l.b16 %v203
    %v460 = vunpack.c.l.b16 %v204
    %v461 = vunpack.c.l.b16 %v205
    %v462 = vunpack.c.l.b16 %v206
    %v463 = vunpack.c.l.b16 %v207
    %v464 = vunpack.c.l.b16 %v208
    %v465 = vunpack.c.l.b16 %v209
    %v466 = vunpack.c.l.b16 %v210
    %v467 = vunpack.c.l.b16 %v211
    %v468 = vunpack.c.l.b16 %v212
    %v469 = vpack.c.b16 %v342, %v341
    %v470 = vpack.c.b16 %v344, %v343
    %v471 = vpack.c.b16 %v346, %v345
    %v472 = vpack.c.b16 %v348, %v347
    %v473 = vpack.c.b16 %v350, %v349
    %v474 = vpack.c.b16 %v352, %v351
    %v475 = vpack.c.b16 %v354, %v353
    %v476 = vpack.c.b16 %v356, %v355
    %v477 = vpack.c.b16 %v358, %v357
    %v478 = vpack.c.b16 %v360, %v359
    %v479 = vpack.c.b16 %v362, %v361
    %v480 = vpack.c.b16 %v364, %v363
    %v481 = vpack.c.b16 %v366, %v365
    %v482 = vpack.c.b16 %v368, %v367
    %v483 = vpack.c.b16 %v370, %v369
    %v484 = vpack.c.b16 %v372, %v371
    %v485 = vpack.c.b16 %v374, %v373
    %v486 = vpack.c.b16 %v376, %v375
    %v487 = vpack.c.b16 %v378, %v377
    %v488 = vpack.c.b16 %v380, %v379
    %v489 = vpack.c.b16 %v382, %v381
    %v490 = vpack.c.b16 %v384, %v383
    %v491 = vpack.c.b16 %v386, %v385
    %v492 = vpack.c.b16 %v388, %v387
    %v493 = vpack.c.b16 %v390, %v389
    %v494 = vpack.c.b16 %v392, %v391
    %v495 = vpack.c.b16 %v394, %v393
    %v496 = vpack.c.b16 %v396, %v395
    %v497 = vpack.c.b16 %v398, %v397
    %v498 = vpack.c.b16 %v400, %v399
    %v499 = vpack.c.b16 %v402, %v401
    %v500 = vpack.c.b16 %v404, %v403
    %v501 = vpack.c.b16 %v406, %v405
    %v502 = vpack.c.b16 %v408, %v407
    %v503 = vpack.c.b16 %v410, %v409
    %v504 = vpack.c.b16 %v412, %v411
    %v505 = vpack.c.b16 %v414, %v413
    %v506 = vpack.c.b16 %v416, %v415
    %v507 = vpack.c.b16 %v418, %v417
    %v508 = vpack.c.b16 %v420, %v419
    %v509 = vpack.c.b16 %v422, %v421
    %v510 = vpack.c.b16 %v424, %v423
    %v511 = vpack.c.b16 %v426, %v425
    %v512 = vpack.c.b16 %v428, %v427
    %v513 = vpack.c.b16 %v430, %v429
    %v514 = vpack.c.b16 %v432, %v431
    %v515 = vpack.c.b16 %v434, %v433
    %v516 = vpack.c.b16 %v436, %v435
    %v517 = vpack.c.b16 %v438, %v437
    %v518 = vpack.c.b16 %v440, %v439
    %v519 = vpack.c.b16 %v442, %v441
    %v520 = vpack.c.b16 %v444, %v443
    %v521 = vpack.c.b16 %v446, %v445
    %v522 = vpack.c.b16 %v448, %v447
    %v523 = vpack.c.b16 %v450, %v449
    %v524 = vpack.c.b16 %v452, %v451
    %v525 = vpack.c.b16 %v454, %v453
    %v526 = vpack.c.b16 %v456, %v455
    %v527 = vpack.c.b16 %v458, %v457
    %v528 = vpack.c.b16 %v460, %v459
    %v529 = vpack.c.b16 %v462, %v461
    %v530 = vpack.c.b16 %v464, %v463
    %v531 = vpack.c.b16 %v466, %v465
    %v532 = vpack.c.b16 %v468, %v467
    %597 = vmatpush.bf16.msra.mxu0 %v476
    %598 = vmatpush.bf16.msra.mxu0 %v475
    %599 = vmatpush.bf16.msra.mxu0 %v474
    %600 = vmatpush.bf16.msra.mxu0 %v473
    %601 = vmatpush.bf16.msra.mxu0 %v472
    %602 = vmatpush.bf16.msra.mxu0 %v471
    %603 = vmatpush.bf16.msra.mxu0 %v470
    %604 = vmatpush.bf16.msra.mxu0 %v469
    %605 = vmatmul.bf16.gmra.mxu0 %v77
    %v606 = vpop.f32.mrf.mxu0
    %v607 = vadd.f32 0.0, %v606
    %v608 = vpop.f32.mrf.mxu0
    %609 = vdwg.mxu0
    %610 = vmatpush.bf16.msra.mxu0 %v484
    %611 = vmatpush.bf16.msra.mxu0 %v483
    %612 = vmatpush.bf16.msra.mxu0 %v482
    %613 = vmatpush.bf16.msra.mxu0 %v481
    %614 = vmatpush.bf16.msra.mxu0 %v480
    %615 = vmatpush.bf16.msra.mxu0 %v479
    %616 = vmatpush.bf16.msra.mxu0 %v478
    %617 = vmatpush.bf16.msra.mxu0 %v477
    %618 = vmatmul.bf16.gmra.mxu0 %v78
    %v619 = vpop.f32.mrf.mxu0
    %v620 = vadd.f32 %v607, %v619
    %v621 = vpop.f32.mrf.mxu0
    %622 = vdwg.mxu0
    %623 = vmatpush.bf16.msra.mxu0 %v492
    %624 = vmatpush.bf16.msra.mxu0 %v491
    %625 = vmatpush.bf16.msra.mxu0 %v490
    %626 = vmatpush.bf16.msra.mxu0 %v489
    %627 = vmatpush.bf16.msra.mxu0 %v488
    %628 = vmatpush.bf16.msra.mxu0 %v487
    %629 = vmatpush.bf16.msra.mxu0 %v486
    %630 = vmatpush.bf16.msra.mxu0 %v485
    %631 = vmatmul.bf16.gmra.mxu0 %v79
    %v632 = vpop.f32.mrf.mxu0
    %v633 = vadd.f32 %v620, %v632
    %v634 = vpop.f32.mrf.mxu0
    %635 = vdwg.mxu0
    %636 = vmatpush.bf16.msra.mxu0 %v500
    %637 = vmatpush.bf16.msra.mxu0 %v499
    %638 = vmatpush.bf16.msra.mxu0 %v498
    %639 = vmatpush.bf16.msra.mxu0 %v497
    %640 = vmatpush.bf16.msra.mxu0 %v496
    %641 = vmatpush.bf16.msra.mxu0 %v495
    %642 = vmatpush.bf16.msra.mxu0 %v494
    %643 = vmatpush.bf16.msra.mxu0 %v493
    %644 = vmatmul.bf16.gmra.mxu0 %v80
    %v645 = vpop.f32.mrf.mxu0
    %v646 = vadd.f32 %v633, %v645
    %v647 = vpop.f32.mrf.mxu0
    %648 = vdwg.mxu0
    %649 = vmatpush.bf16.msra.mxu0 %v508
    %650 = vmatpush.bf16.msra.mxu0 %v507
    %651 = vmatpush.bf16.msra.mxu0 %v506
    %652 = vmatpush.bf16.msra.mxu0 %v505
    %653 = vmatpush.bf16.msra.mxu0 %v504
    %654 = vmatpush.bf16.msra.mxu0 %v503
    %655 = vmatpush.bf16.msra.mxu0 %v502
    %656 = vmatpush.bf16.msra.mxu0 %v501
    %657 = vmatmul.bf16.gmra.mxu0 %v81
    %v658 = vpop.f32.mrf.mxu0
    %v659 = vadd.f32 %v646, %v658
    %v660 = vpop.f32.mrf.mxu0
    %661 = vdwg.mxu0
    %662 = vmatpush.bf16.msra.mxu0 %v516
    %663 = vmatpush.bf16.msra.mxu0 %v515
    %664 = vmatpush.bf16.msra.mxu0 %v514
    %665 = vmatpush.bf16.msra.mxu0 %v513
    %666 = vmatpush.bf16.msra.mxu0 %v512
    %667 = vmatpush.bf16.msra.mxu0 %v511
    %668 = vmatpush.bf16.msra.mxu0 %v510
    %669 = vmatpush.bf16.msra.mxu0 %v509
    %670 = vmatmul.bf16.gmra.mxu0 %v82
    %v671 = vpop.f32.mrf.mxu0
    %v672 = vadd.f32 %v659, %v671
    %v673 = vpop.f32.mrf.mxu0
    %674 = vdwg.mxu0
    %675 = vmatpush.bf16.msra.mxu0 %v524
    %676 = vmatpush.bf16.msra.mxu0 %v523
    %677 = vmatpush.bf16.msra.mxu0 %v522
    %678 = vmatpush.bf16.msra.mxu0 %v521
    %679 = vmatpush.bf16.msra.mxu0 %v520
    %680 = vmatpush.bf16.msra.mxu0 %v519
    %681 = vmatpush.bf16.msra.mxu0 %v518
    %682 = vmatpush.bf16.msra.mxu0 %v517
    %683 = vmatmul.bf16.gmra.mxu0 %v83
    %v684 = vpop.f32.mrf.mxu0
    %v685 = vadd.f32 %v672, %v684
    %v686 = vpop.f32.mrf.mxu0
    %687 = vdwg.mxu0
    %688 = vmatpush.bf16.msra.mxu0 %v532
    %689 = vmatpush.bf16.msra.mxu0 %v531
    %690 = vmatpush.bf16.msra.mxu0 %v530
    %691 = vmatpush.bf16.msra.mxu0 %v529
    %692 = vmatpush.bf16.msra.mxu0 %v528
    %693 = vmatpush.bf16.msra.mxu0 %v527
    %694 = vmatpush.bf16.msra.mxu0 %v526
    %695 = vmatpush.bf16.msra.mxu0 %v525
    %696 = vmatmul.bf16.gmra.mxu0 %v84
    %v697 = vpop.f32.mrf.mxu0
    %v698 = vadd.f32 %v685, %v697
    %v699 = vpop.f32.mrf.mxu0
    %700 = vdwg.mxu0
    %v701 = vadd.f32 %v68, %v698
    %702 = vst [vmem:[#allocation2] sm:$0xff] %v701
    // Predicated region
    $region34: #{tpu_custom_call.1} parent=1 // pred_check
      %p703 = pneg %p63
    $region35: #{tpu_custom_call.1} parent=1 // pred_check_branch
      %705 = sbr.rel (%p703) target = $region37
    $region36: #{tpu_custom_call.1} parent=1 // pred_region
      %v706 = vld [vmem:[#allocation2] sm:$0xff]
      %v707 = vmax.f32 %v706, 0.0
      %v708 = vmul.f32 %v707, %v707
      %709 = vadd.xlane.f32.xlu0 %v708
      %v710 = vpop.xlane.xlu0 %709
      %v711 = vmax.f32 %v710, 1e-30
      %v712 = vrsqrt.pop %v711
      %v713 = vmul.f32 %v712, %v711
      %v714 = vmul.f32 %v713, %v712
      %v715 = vmul.f32 0.5, %v714
      %v716 = vsub.f32 1.5, %v715
      %v717 = vmul.f32 %v712, %v716
      %vm718 = vweird.f32 %v711
      %vm719 = vweird.f32 %v712
      %vm720 = vmor %vm718, %vm719
      %v721 = vsel %vm720, %v712, %v717
      %v722 = vmul.f32 %v707, %v721
      %v723 = vpack.c.bf16 %v722, %v722
      %v724 = vld [vmem:[#allocation8] sm:$0xf]
      %v725 = vld [vmem:[#allocation8 + $0x4] sm:$0xf]
      %v726 = vld [vmem:[#allocation8 + $0x8] sm:$0xf]
      %v727 = vld [vmem:[#allocation8 + $0xc] sm:$0xf]
      %v728 = vld [vmem:[#allocation8 + $0x10] sm:$0xf]
      %v729 = vld [vmem:[#allocation8 + $0x14] sm:$0xf]
      %v730 = vld [vmem:[#allocation8 + $0x18] sm:$0xf]
      %v731 = vld [vmem:[#allocation8 + $0x1c] sm:$0xf]
      %v732 = vld [vmem:[#allocation8 + $0x20] sm:$0xf]
      %v733 = vld [vmem:[#allocation8 + $0x24] sm:$0xf]
      %v734 = vld [vmem:[#allocation8 + $0x28] sm:$0xf]
      %v735 = vld [vmem:[#allocation8 + $0x2c] sm:$0xf]
      %v736 = vld [vmem:[#allocation8 + $0x30] sm:$0xf]
      %v737 = vld [vmem:[#allocation8 + $0x34] sm:$0xf]
      %v738 = vld [vmem:[#allocation8 + $0x38] sm:$0xf]
      %v739 = vld [vmem:[#allocation8 + $0x3c] sm:$0xf]
      %v740 = vld [vmem:[%s3] sm:$0x1]
      %v742 = vperm.slane %v740, 0
      %v760 = vunpack.c.l.b16 %v724
      %v761 = vunpack.c.l.b16 %v725
      %v762 = vunpack.c.l.b16 %v726
      %v763 = vunpack.c.l.b16 %v727
      %v764 = vunpack.c.l.b16 %v728
      %v765 = vunpack.c.l.b16 %v729
      %v766 = vunpack.c.l.b16 %v730
      %v767 = vunpack.c.l.b16 %v731
      %v768 = vunpack.c.l.b16 %v732
      %v769 = vunpack.c.l.b16 %v733
      %v770 = vunpack.c.l.b16 %v734
      %v771 = vunpack.c.l.b16 %v735
      %v772 = vunpack.c.l.b16 %v736
      %v773 = vunpack.c.l.b16 %v737
      %v774 = vunpack.c.l.b16 %v738
      %v775 = vunpack.c.l.b16 %v739
      %v776 = vpack.c.b16 %v761, %v760
      %v777 = vpack.c.b16 %v763, %v762
      %v778 = vpack.c.b16 %v765, %v764
      %v779 = vpack.c.b16 %v767, %v766
      %v780 = vpack.c.b16 %v769, %v768
      %v781 = vpack.c.b16 %v771, %v770
      %v782 = vpack.c.b16 %v773, %v772
      %v783 = vpack.c.b16 %v775, %v774
      %792 = vmatpush.bf16.msra.mxu0 %v783
      %793 = vmatpush.bf16.msra.mxu0 %v782
      %794 = vmatpush.bf16.msra.mxu0 %v781
      %795 = vmatpush.bf16.msra.mxu0 %v780
      %796 = vmatpush.bf16.msra.mxu0 %v779
      %797 = vmatpush.bf16.msra.mxu0 %v778
      %798 = vmatpush.bf16.msra.mxu0 %v777
      %799 = vmatpush.bf16.msra.mxu0 %v776
      %800 = vmatmul.bf16.gmra.mxu0 %v723
      %v801 = vpop.f32.mrf.mxu0
      %v802 = vadd.f32 %v742, %v801
      %v803 = vpop.f32.mrf.mxu0
      %804 = vdwg.mxu0
      %v805 = vmul.f32 %v802, %v802
      %806 = vadd.xlane.f32.xlu0 %v805
      %v807 = vpop.xlane.xlu0 %806
      %v808 = vmax.f32 %v807, 1e-30
      %v809 = vrsqrt.pop %v808
      %v810 = vmul.f32 %v809, %v808
      %v811 = vmul.f32 %v810, %v809
      %v812 = vmul.f32 0.5, %v811
      %v813 = vsub.f32 1.5, %v812
      %v814 = vmul.f32 %v809, %v813
      %vm815 = vweird.f32 %v808
      %vm816 = vweird.f32 %v809
      %vm817 = vmor %vm815, %vm816
      %v818 = vsel %vm817, %v809, %v814
      %v819 = vmul.f32 %v802, %v818
      %820 = vst [vmem:[#allocation9] sm:$0xff] %v819
    $region37: #{tpu_custom_call.1} parent=1 // pred_fallthru
      _
    // Predicated region
    $region38: #{tpu_custom_call.1} parent=1 // pred_check
      _
    $region39: #{tpu_custom_call.1} parent=1 // pred_check_branch
      %822 = sbr.rel (0) target = $region41
    $region40: #{tpu_custom_call.1} parent=1 // pred_region
      %824 = vsyncadd [#allocation5], 0
      %s826 = sshll.u32 [#allocation9], 4
      %s827 = int_to_ptr.vmem [resolvable:$true] %s826
      %s828 = sshll.u32 %s4, 4
      %s829 = int_to_ptr.hbm [resolvable:$true] %s828
      %831 = dma.vmem_to_hbm [thread:$0]  %s827, 128, %s829, [#allocation5]
    $region41: #{tpu_custom_call.1} parent=1 // pred_fallthru
      _
    // Predicated region
    $region42: #{tpu_custom_call.1} parent=1 // pred_check
      _
    $region43: #{tpu_custom_call.1} parent=1 // pred_check_branch
      %833 = sbr.rel (0) target = $region45
    $region44: #{tpu_custom_call.1} parent=1 // pred_region
      %835 = dma.done [#allocation5], 128
    $region45: #{tpu_custom_call.1} parent=1 // pred_fallthru
      _
    %836 = vsyncpa [#allocation4], 1
    %837 = vsyncpa [#allocation7], 1
    %838 = vsyncpa [#allocation5], 1

</llo_original>
